<compile_context>
chip_gen: v7x
topology: tpu7x:2x2x1
jax: 0.10.0
libtpu: 0.0.40
codegen_flags: <defaults>
</compile_context>

<pallas_src>
import jax
import jax.numpy as jnp
from jax.experimental import pallas as pl
from jax.experimental.pallas import tpu as pltpu


def _attention_kernel(enc_ref, h_ref, we_ref, v_ref, out_ref):
    # Per grid step (TB batch elements at once):
    #   enc_ref : (TB, S, E)  encoder outputs
    #   h_ref   : (TB, A)     hidden projection (hid @ Wh + b_attn), precomputed in wrapper
    #   we_ref  : (E, A)      encoder-side slice of the attention weight
    #   v_ref   : (1, A)      scoring vector
    #   out_ref : (TB, S)     softmaxed attention weights (sequence on the lane axis)
    TB, S, E = enc_ref.shape
    A = we_ref.shape[1]

    # One large-M matmul over all TB*S rows (fills the MXU M dimension).
    enc2d = enc_ref[...].reshape(TB * S, E)
    e_proj = jnp.dot(enc2d, we_ref[...], preferred_element_type=jnp.float32)
    e_proj = e_proj.reshape(TB, S, A)

    # energy = tanh(encoder_proj + hidden_proj)  (bias already folded into h_ref)
    energy = jnp.tanh(e_proj + h_ref[...][:, None, :])        # (TB, S, A)

    # Scores: VPU multiply + cross-lane (XLU) reduction instead of an N=1 MXU matmul.
    # The scoring bias b_v is omitted: a constant shift cancels exactly in softmax.
    scores = jnp.sum(energy * v_ref[...], axis=-1)            # (TB, S)

    # Softmax over the sequence axis (lane axis).
    m = jnp.max(scores, axis=-1, keepdims=True)
    e = jnp.exp(scores - m)
    denom = jnp.sum(e, axis=-1, keepdims=True)
    w = e * pl.reciprocal(denom, approx=False)                # exact recip keeps 1e-5 tol
    out_ref[...] = w.astype(out_ref.dtype)


def _pick_batch_tile(B, S, E, A):
    """Batch-tile heuristic.

    Valid tiles must divide B and be either B itself or a multiple of 8 (BlockSpec
    second-minor constraint on the (TB, S) / (TB, A) blocks). Prefer the smallest tile
    giving >= 256 matmul rows per step (fills the v6e/v7x MXU M dim); otherwise the
    largest tile that stays comfortably inside the smallest scoped-VMEM default (v5e).
    """
    budget = 12 * 1024 * 1024

    def step_bytes(tb):
        enc = tb * S * E * 4 * 2        # double-buffered input
        hid = tb * A * 4 * 2
        out = tb * S * 4 * 2
        interm = tb * S * A * 4 * 2     # energy intermediate
        return enc + hid + out + interm

    valid = [d for d in range(1, B + 1) if B % d == 0 and (d == B or d % 8 == 0)]
    fitting = [d for d in valid if step_bytes(d) <= budget]
    pool = fitting if fitting else [min(valid)]
    for d in sorted(pool):
        if d * S >= 256:
            return d
    return max(pool)


def attention_forward(encoder_outputs, hidden, params):
    """encoder_outputs: [B, S, 2*enc_hid]; hidden: [2, B, dec_hid] -> weights [B, S]."""
    w_attn_t, b_attn, w_v_t, b_v = params
    del b_v  # cancels in softmax; not needed in the kernel
    B, S, E = encoder_outputs.shape
    dec2 = 2 * hidden.shape[2]
    A = w_attn_t.shape[1]

    # Split the attention weight by the torch.cat order: [hidden_reshape | encoder_outputs].
    wh = w_attn_t[:dec2]                                    # (2*dec_hid, A)
    we = w_attn_t[dec2:].astype(jnp.float32)                # (2*enc_hid, A)

    # Hoisted hidden projection: one (B, dec2) @ (dec2, A) XLA matmul for the whole batch.
    hid_flat = jnp.transpose(hidden, (1, 0, 2)).reshape(B, dec2)
    h_all = (hid_flat @ wh + b_attn).astype(jnp.float32)    # (B, A)

    v = w_v_t.reshape(1, A).astype(jnp.float32)
    enc = encoder_outputs.astype(jnp.float32)

    tb = _pick_batch_tile(B, S, E, A)

    out = pl.pallas_call(
        _attention_kernel,
        out_shape=jax.ShapeDtypeStruct((B, S), jnp.float32),
        grid_spec=pltpu.PrefetchScalarGridSpec(
            num_scalar_prefetch=0,
            grid=(B // tb,),
            in_specs=[
                pl.BlockSpec((tb, S, E), lambda b: (b, 0, 0)),
                pl.BlockSpec((tb, A), lambda b: (b, 0)),
                pl.BlockSpec((E, A), lambda b: (0, 0)),
                pl.BlockSpec((1, A), lambda b: (0, 0)),
            ],
            out_specs=pl.BlockSpec((tb, S), lambda b: (b, 0)),
        ),
        compiler_params=pltpu.CompilerParams(
            dimension_semantics=("parallel",)),
    )(enc, h_all, we, v)
    return out


def attention_reference(encoder_outputs, hidden, params):
    """Pure-JAX reference mirroring the PyTorch forward exactly (including + b_v)."""
    w_attn_t, b_attn, w_v_t, b_v = params
    B, S, _ = encoder_outputs.shape
    dec2 = 2 * hidden.shape[2]
    hid = jnp.transpose(hidden, (1, 0, 2)).reshape(B, dec2)
    hid_rep = jnp.broadcast_to(hid[:, None, :], (B, S, dec2))
    cat = jnp.concatenate([hid_rep, encoder_outputs], axis=2)
    energy = jnp.tanh(cat @ w_attn_t + b_attn)
    attention = (energy @ w_v_t.reshape(-1, 1))[..., 0] + b_v
    return jax.nn.softmax(attention, axis=1)


def init_params(key, enc_hid, attention_dim, dec_hid):
    """Deterministic nn.Linear-style init (uniform +/- 1/sqrt(fan_in))."""
    in_dim = 2 * enc_hid + 2 * dec_hid
    k1, k2, k3, k4 = jax.random.split(key, 4)
    lim1 = 1.0 / (in_dim ** 0.5)
    w_attn_t = jax.random.uniform(k1, (in_dim, attention_dim), jnp.float32, -lim1, lim1)
    b_attn = jax.random.uniform(k2, (attention_dim,), jnp.float32, -lim1, lim1)
    lim2 = 1.0 / (attention_dim ** 0.5)
    w_v_t = jax.random.uniform(k3, (attention_dim,), jnp.float32, -lim2, lim2)
    b_v = jax.random.uniform(k4, (), jnp.float32, -lim2, lim2)
    return w_attn_t, b_attn, w_v_t, b_v


if __name__ == "__main__":
    enc_hid, attention_dim, dec_hid = 16, 32, 16
    B, S = 2, 8

    key = jax.random.PRNGKey(0)
    kp, ke, kh = jax.random.split(key, 3)
    params = init_params(kp, enc_hid, attention_dim, dec_hid)
    encoder_outputs = jax.random.normal(ke, (B, S, 2 * enc_hid), jnp.float32)
    hidden = jax.random.normal(kh, (2, B, dec_hid), jnp.float32)

    weights = jax.block_until_ready(attention_forward(encoder_outputs, hidden, params))
    ref = attention_reference(encoder_outputs, hidden, params)

    assert weights.shape == (B, S)
    assert jnp.allclose(jnp.sum(weights, axis=1), 1.0, atol=1e-5)
    assert jnp.allclose(weights, ref, atol=1e-5, rtol=1e-5)
    print("KERNEL_OK")
</pallas_src>

<mosaic_0001>
module attributes {stable_mosaic.version = 11 : i64} {
  func.func @_attention_kernel(%arg0: i32, %arg1: memref<2x8x32xf32, #tpu.memory_space<vmem>>, %arg2: memref<2x32xf32, #tpu.memory_space<vmem>>, %arg3: memref<32x32xf32, #tpu.memory_space<vmem>>, %arg4: memref<1x32xf32, #tpu.memory_space<vmem>>, %arg5: memref<2x8xf32, #tpu.memory_space<vmem>>) attributes {dimension_semantics = [#tpu.dimension_semantics<parallel>], iteration_bounds = array<i64: 1>, scalar_prefetch = 0 : i64, scratch_operands = 0 : i64, tpu.core_type = #tpu.core_type<tc>, window_params = [{transform_indices = @transform_0, window_bounds = array<i64: 2, 8, 32>}, {transform_indices = @transform_1, window_bounds = array<i64: 2, 32>}, {pipeline_mode = #tpu.pipeline_mode<synchronous>, transform_indices = @transform_2, window_bounds = array<i64: 32, 32>}, {pipeline_mode = #tpu.pipeline_mode<synchronous>, transform_indices = @transform_3, window_bounds = array<i64: 1, 32>}, {transform_indices = @transform_4, window_bounds = array<i64: 2, 8>}]} {
    %c0 = arith.constant 0 : index
    %c0_0 = arith.constant 0 : index
    %c0_1 = arith.constant 0 : index
    %0 = vector.load %arg1[%c0, %c0_0, %c0_1] : memref<2x8x32xf32, #tpu.memory_space<vmem>>, vector<2x8x32xf32>
    %1 = vector.shape_cast %0 : vector<2x8x32xf32> to vector<16x32xf32>
    %c0_2 = arith.constant 0 : index
    %c0_3 = arith.constant 0 : index
    %2 = vector.load %arg3[%c0_2, %c0_3] : memref<32x32xf32, #tpu.memory_space<vmem>>, vector<32x32xf32>
    %cst = arith.constant dense<0.000000e+00> : vector<16x32xf32>
    %3 = tpu.matmul %1, %2, %cst {dimension_numbers = #tpu.dot_dimension_numbers<[1], [0], [0], [1], [0, 0, 1, 1], [], []>} : vector<16x32xf32>, vector<32x32xf32>, vector<16x32xf32> -> vector<16x32xf32>
    %4 = vector.shape_cast %3 : vector<16x32xf32> to vector<2x8x32xf32>
    %c0_4 = arith.constant 0 : index
    %c0_5 = arith.constant 0 : index
    %5 = vector.load %arg2[%c0_4, %c0_5] : memref<2x32xf32, #tpu.memory_space<vmem>>, vector<2x32xf32>
    %6 = vector.shape_cast %5 : vector<2x32xf32> to vector<2x1x32xf32>
    %7 = vector.broadcast %6 : vector<2x1x32xf32> to vector<2x8x32xf32>
    %8 = arith.addf %4, %7 : vector<2x8x32xf32>
    %9 = math.tanh %8 : vector<2x8x32xf32>
    %c0_6 = arith.constant 0 : index
    %c0_7 = arith.constant 0 : index
    %10 = vector.load %arg4[%c0_6, %c0_7] : memref<1x32xf32, #tpu.memory_space<vmem>>, vector<1x32xf32>
    %11 = vector.shape_cast %10 : vector<1x32xf32> to vector<1x1x32xf32>
    %12 = vector.broadcast %11 : vector<1x1x32xf32> to vector<2x8x32xf32>
    %13 = arith.mulf %9, %12 : vector<2x8x32xf32>
    %cst_8 = arith.constant dense<0.000000e+00> : vector<2x8xf32>
    %14 = vector.multi_reduction <add>, %13, %cst_8 [2] : vector<2x8x32xf32> to vector<2x8xf32>
    %cst_9 = arith.constant dense<0xFF800000> : vector<2xf32>
    %15 = vector.multi_reduction <maximumf>, %14, %cst_9 [1] : vector<2x8xf32> to vector<2xf32>
    %16 = vector.shape_cast %15 : vector<2xf32> to vector<2x1xf32>
    %17 = vector.broadcast %16 : vector<2x1xf32> to vector<2x8xf32>
    %18 = arith.subf %14, %17 : vector<2x8xf32>
    %19 = math.exp %18 : vector<2x8xf32>
    %cst_10 = arith.constant dense<0.000000e+00> : vector<2xf32>
    %20 = vector.multi_reduction <add>, %19, %cst_10 [1] : vector<2x8xf32> to vector<2xf32>
    %21 = vector.shape_cast %20 : vector<2xf32> to vector<2x1xf32>
    %22 = tpu.reciprocal %21 : vector<2x1xf32> -> vector<2x1xf32>
    %23 = vector.broadcast %22 : vector<2x1xf32> to vector<2x8xf32>
    %24 = arith.mulf %19, %23 : vector<2x8xf32>
    %c0_11 = arith.constant 0 : index
    %c0_12 = arith.constant 0 : index
    %25 = vector.load %arg5[%c0_11, %c0_12] : memref<2x8xf32, #tpu.memory_space<vmem>>, vector<2x8xf32>
    tpu.vector_store %arg5[%c0_11, %c0_12], %24 {strides = array<i32>} : memref<2x8xf32, #tpu.memory_space<vmem>>, vector<2x8xf32>,
    return
  }
  func.func @transform_0(%arg0: i32) -> (i32, i32, i32) {
    %c0_i32 = arith.constant 0 : i32
    %c0_i32_0 = arith.constant 0 : i32
    %c0_i32_1 = arith.constant 0 : i32
    return %arg0, %c0_i32, %c0_i32_0 : i32, i32, i32
  }
  func.func @transform_1(%arg0: i32) -> (i32, i32) {
    %c0_i32 = arith.constant 0 : i32
    %c0_i32_0 = arith.constant 0 : i32
    return %arg0, %c0_i32 : i32, i32
  }
  func.func @transform_2(%arg0: i32) -> (i32, i32) {
    %c0_i32 = arith.constant 0 : i32
    %c0_i32_0 = arith.constant 0 : i32
    %c0_i32_1 = arith.constant 0 : i32
    return %c0_i32, %c0_i32_0 : i32, i32
  }
  func.func @transform_3(%arg0: i32) -> (i32, i32) {
    %c0_i32 = arith.constant 0 : i32
    %c0_i32_0 = arith.constant 0 : i32
    %c0_i32_1 = arith.constant 0 : i32
    return %c0_i32, %c0_i32_0 : i32, i32
  }
  func.func @transform_4(%arg0: i32) -> (i32, i32) {
    %c0_i32 = arith.constant 0 : i32
    %c0_i32_0 = arith.constant 0 : i32
    return %arg0, %c0_i32 : i32, i32
  }
}

</mosaic_0001>

<llo_original>
// kernel: tpu_custom_call.1
$region0: #{tpu_custom_call.1}
  #allocation0 [shape = 'u32[]', space=smem, size = 0x4, offset = 0x4, fixed_abs, tag = 'smem constant byte address 0x4 - core index']
  #allocation1 [shape = 'u32[144,128]{1,0:T(1,128)}', space=vmem, size = 0x12000, scoped, tag = 'internal scratch']
  %s0 = inlined_call_operand.hbm [shape: f32[2,8,32], index: 0, kind: input, shape index: {}]
  %s1 = inlined_call_operand.vmem [shape: f32[2,32], index: 1, kind: input, shape index: {}]
  %s2 = inlined_call_operand.hbm [shape: f32[32,32], index: 2, kind: input, shape index: {}]
  %s3 = inlined_call_operand.vmem [shape: f32[1,32], index: 3, kind: input, shape index: {}]
  %s4 = inlined_call_operand.hbm [shape: f32[2,8], index: 4, kind: output, shape index: {}]
  %s5 = sld [smem:[#allocation0]]
  $region34: #{tpu_custom_call.1} parent=0
    _
  %s7 = ssub.s32 1, %s5
  %s8 = scalar_select 0, %s7, %s5
  $region1: #{tpu_custom_call.1} parent=0
    #allocation2 [shape = 'u8[8192]{0}', space=vmem, size = 0x2000, scoped, tag = 'input window, operand 0, single buffered']
    #allocation3 [shape = 's32[1]{0}', space=sflag, size = 0x4, scoped, tag = 'scoped memory for tpu_custom_call.1']
    #allocation4 [shape = 's32[1]{0}', space=sflag, size = 0x4, scoped, tag = 'scoped memory for tpu_custom_call.1']
    #allocation5 [shape = 'u8[16384]{0}', space=vmem, size = 0x4000, scoped, tag = 'input window, operand 2, single buffered']
    #allocation6 [shape = 's32[1]{0}', space=sflag, size = 0x4, scoped, tag = 'scoped memory for tpu_custom_call.1']
    #allocation7 [shape = 'u8[1024]{0}', space=vmem, size = 0x400, scoped, tag = 'output window, operand 0, single buffered']
    %9 = vsyncpa [#allocation3], 0
    %10 = vsyncpa [#allocation6], 0
    %11 = vsyncpa [#allocation4], 0
    // Predicated region
    $region2: #{tpu_custom_call.1} parent=1 // pred_check
      _
    $region3: #{tpu_custom_call.1} parent=1 // pred_check_branch
      %13 = sbr.rel (0) target = $region5
    $region4: #{tpu_custom_call.1} parent=1 // pred_region
      %s15 = ssub.s32 256, 256
      %16 = vsyncadd [#allocation3], %s15
      %s17 = sshll.u32 [#allocation2], 4
      %s18 = int_to_ptr.vmem [resolvable:$true] %s17
      %23 = dma.hbm_to_vmem [thread:$0]  %s0, 256, %s18, [#allocation3], 128, 128, 8
    $region5: #{tpu_custom_call.1} parent=1 // pred_fallthru
      _
    // Predicated region
    $region6: #{tpu_custom_call.1} parent=1 // pred_check
      _
    $region7: #{tpu_custom_call.1} parent=1 // pred_check_branch
      %25 = sbr.rel (0) target = $region9
    $region8: #{tpu_custom_call.1} parent=1 // pred_region
      _
    $region9: #{tpu_custom_call.1} parent=1 // pred_fallthru
      _
    // Predicated region
    $region10: #{tpu_custom_call.1} parent=1 // pred_check
      _
    $region11: #{tpu_custom_call.1} parent=1 // pred_check_branch
      %27 = sbr.rel (0) target = $region13
    $region12: #{tpu_custom_call.1} parent=1 // pred_region
      %s29 = ssub.s32 512, 512
      %30 = vsyncadd [#allocation6], %s29
      %s31 = sshll.u32 [#allocation5], 4
      %s32 = int_to_ptr.vmem [resolvable:$true] %s31
      %37 = dma.hbm_to_vmem [thread:$0]  %s2, 512, %s32, [#allocation6], 128, 128, 8
    $region13: #{tpu_custom_call.1} parent=1 // pred_fallthru
      _
    // Predicated region
    $region14: #{tpu_custom_call.1} parent=1 // pred_check
      _
    $region15: #{tpu_custom_call.1} parent=1 // pred_check_branch
      %39 = sbr.rel (0) target = $region17
    $region16: #{tpu_custom_call.1} parent=1 // pred_region
      _
    $region17: #{tpu_custom_call.1} parent=1 // pred_fallthru
      _
    // Predicated region
    $region18: #{tpu_custom_call.1} parent=1 // pred_check
      _
    $region19: #{tpu_custom_call.1} parent=1 // pred_check_branch
      %41 = sbr.rel (0) target = $region21
    $region20: #{tpu_custom_call.1} parent=1 // pred_region
      %42 = dma.done [#allocation3], 256
    $region21: #{tpu_custom_call.1} parent=1 // pred_fallthru
      _
    // Predicated region
    $region22: #{tpu_custom_call.1} parent=1 // pred_check
      _
    $region23: #{tpu_custom_call.1} parent=1 // pred_check_branch
      %44 = sbr.rel (0) target = $region25
    $region24: #{tpu_custom_call.1} parent=1 // pred_region
      %45 = dma.done [#allocation6], 512
    $region25: #{tpu_custom_call.1} parent=1 // pred_fallthru
      _
    %v46 = vld [vmem:[#allocation2] sm:$0xff]
    %v47 = vld [vmem:[#allocation2 + $0x8] sm:$0xff]
    %v48 = vld [vmem:[#allocation5] sm:$0xff]
    %v49 = vld [vmem:[#allocation5 + $0x8] sm:$0xff]
    %v50 = vld [vmem:[#allocation5 + $0x10] sm:$0xff]
    %v51 = vld [vmem:[#allocation5 + $0x18] sm:$0xff]
    %vm52 = vcmask 261120
    %v54 = vsel %vm52, %v46, 0
    %v57 = vsel %vm52, %v47, 0
    %59 = vmatprep.subr.mxu0 0.0
    %60 = vmatpush1.msra.mxu0 %v48
    %61 = vmatprep.subr.mxu0 0.0
    %62 = vmatpush1.msra.mxu0 %v49
    %63 = vmatprep.subr.mxu0 0.0
    %64 = vmatpush1.msra.mxu0 %v50
    %65 = vmatprep.subr.mxu0 0.0
    %66 = vmatpush1.msra.mxu0 %v51
    %67 = vmatprep.subr.mxu0 0.0
    %68 = vmatpush1.msra.mxu0 0.0
    %69 = vmatprep.subr.mxu0 0.0
    %70 = vmatpush1.msra.mxu0 0.0
    %71 = vmatprep.subr.mxu0 0.0
    %72 = vmatpush1.msra.mxu0 0.0
    %73 = vmatprep.subr.mxu0 0.0
    %74 = vmatpush1.msra.mxu0 0.0
    %75 = vmatprep.subr.mxu0 0.0
    %76 = vmatpush1.msra.mxu0 0.0
    %77 = vmatprep.subr.mxu0 0.0
    %78 = vmatpush1.msra.mxu0 0.0
    %79 = vmatprep.subr.mxu0 0.0
    %80 = vmatpush1.msra.mxu0 0.0
    %81 = vmatprep.subr.mxu0 0.0
    %82 = vmatpush1.msra.mxu0 0.0
    %83 = vmatprep.subr.mxu0 0.0
    %84 = vmatpush1.msra.mxu0 0.0
    %85 = vmatprep.subr.mxu0 0.0
    %86 = vmatpush1.msra.mxu0 0.0
    %87 = vmatprep.subr.mxu0 0.0
    %88 = vmatpush1.msra.mxu0 0.0
    %89 = vmatprep.subr.mxu0 0.0
    %90 = vmatpush1.msra.mxu0 0.0
    %91 = vmatprep.subr.mxu0 0.0
    %92 = vmatpush1.msra.mxu0 0.0
    %93 = vmatprep.subr.mxu0 0.0
    %94 = vmatpush1.msra.mxu0 0.0
    %95 = vmatprep.subr.mxu0 0.0
    %96 = vmatpush1.msra.mxu0 0.0
    %97 = vmatprep.subr.mxu0 0.0
    %98 = vmatpush1.msra.mxu0 0.0
    %99 = vmatprep.subr.mxu0 0.0
    %100 = vmatpush1.msra.mxu0 0.0
    %101 = vmatprep.subr.mxu0 0.0
    %102 = vmatpush1.msra.mxu0 0.0
    %103 = vmatprep.subr.mxu0 0.0
    %104 = vmatpush1.msra.mxu0 0.0
    %105 = vmatprep.subr.mxu0 0.0
    %106 = vmatpush1.msra.mxu0 0.0
    %107 = vmatprep.subr.mxu0 0.0
    %108 = vmatpush1.msra.mxu0 0.0
    %109 = vmatprep.subr.mxu0 0.0
    %110 = vmatpush1.msra.mxu0 0.0
    %111 = vmatprep.subr.mxu0 0.0
    %112 = vmatpush1.msra.mxu0 0.0
    %113 = vmatprep.subr.mxu0 0.0
    %114 = vmatpush1.msra.mxu0 0.0
    %115 = vmatprep.subr.mxu0 0.0
    %116 = vmatpush1.msra.mxu0 0.0
    %117 = vmatprep.subr.mxu0 0.0
    %118 = vmatpush1.msra.mxu0 0.0
    %119 = vmatprep.subr.mxu0 0.0
    %120 = vmatpush1.msra.mxu0 0.0
    %121 = vmatprep.subr.mxu0 0.0
    %122 = vmatpush1.msra.mxu0 0.0
    %123 = vmatprep.mubr.f32.mxu0 0.0
    %124 = vmatmul.mubr.f32.gmra.mrb[0].mxu0 %v54
    %v125 = vpop.f32.mrb[0].mxu0
    %v126 = vadd.f32 0.0, %v125
    %v127 = vpop.f32.mrb[0].mxu0
    %128 = vmatprep.mubr.f32.mxu0 0.0
    %129 = vmatmul.mubr.f32.gmra.mrb[0].mxu0 %v57
    %v130 = vpop.f32.mrb[0].mxu0
    %v131 = vadd.f32 0.0, %v130
    %v132 = vpop.f32.mrb[0].mxu0
    %133 = vdwg.mxu0
    %v134 = vld [vmem:[%s1] sm:$0x3]
    %v137 = vunpack.c.l.s4 1966171168
    %v138 = vunpack.c.0.s8 %v137
    %v139 = vlaneseq
    %v140 = vshrl.u32 %v139, 7
    %v141 = vsub.s32 %v138, %v140
    %v142 = vrot.slane %v134, %v141
    %v143 = vcombine.high %v142, %v142
    %v145 = vunpack.c.l.s4 1966171168
    %v146 = vunpack.c.0.s8 %v145
    %v147 = vlaneseq
    %v148 = vshrl.u32 %v147, 7
    %v149 = vsub.s32 %v146, %v148
    %v150 = vrot.slane %v142, %v149
    %v152 = vunpack.c.l.s4 1966171168
    %v153 = vunpack.c.0.s8 %v152
    %v154 = vlaneseq
    %v155 = vshrl.u32 %v154, 7
    %v156 = vsub.s32 %v153, %v155
    %v157 = vrot.slane %v143, %v156
    %v158 = vlaneseq
    %v159 = vshrl.u32 %v158, 7
    %v160 = vsub.s32 0, %v159
    %v161 = vrot.slane %v150, %v160
    %v162 = vlaneseq
    %v163 = vshrl.u32 %v162, 7
    %v164 = vsub.s32 0, %v163
    %v165 = vrot.slane %v157, %v164
    %v168 = vadd.f32 %v126, %v161
    %v169 = vadd.f32 %v131, %v165
    %v170 = vtanh.pop %v168
    %v171 = vtanh.pop %v169
    %v172 = vld [vmem:[%s3] sm:$0x1]
    %v174 = vlaneseq
    %v175 = vshrl.u32 %v174, 7
    %v176 = vsub.s32 0, %v175
    %v177 = vrot.slane %v172, %v176
    %v179 = vmul.f32 %v170, %v177
    %v180 = vmul.f32 %v171, %v177
    %v181 = vsel %vm52, %v179, 0.0
    %182 = vadd.xlane.f32.xlu0 %v181
    %v183 = vpop.xlane.xlu0 %182
    %v184 = vsel %vm52, %v180, 0.0
    %185 = vadd.xlane.f32.xlu0 %v184
    %v186 = vpop.xlane.xlu0 %185
    %v189 = vlaneseq
    %v190 = vand.u32 %v189, 127
    %v191 = vlaneseq
    %v192 = vshrl.u32 %v191, 7
    %v193 = vsub.s32 %v190, %v192
    %v194 = vrot.slane %v183, %v193
    %v195 = vlaneseq
    %v196 = vshrl.u32 %v195, 7
    %v197 = vsub.s32 %v190, %v196
    %v198 = vrot.slane %v186, %v197
    %vm199 = vcmask 1041409
    %v200 = vsel %vm199, %v198, %v194
    %vm202 = vcmask 58368
    %v203 = vsel %vm202, %v200, -inf
    %204 = vmax.xlane.f32.xlu0 %v203
    %v205 = vpop.xlane.xlu0 %204
    %v207 = vlaneseq
    %v208 = vshrl.u32 %v207, 7
    %v209 = vsub.s32 0, %v208
    %v210 = vrot.slane %v205, %v209
    %v211 = vlaneseq
    %v212 = vshrl.u32 %v211, 7
    %v213 = vsub.s32 1, %v212
    %v214 = vrot.slane %v205, %v213
    %v217 = vsub.f32 %v183, %v210
    %v218 = vsub.f32 %v186, %v214
    %v219 = vmul.f32 %v217, 1.442695
    %v220 = vpow.pop %v219
    %v221 = vmul.f32 %v218, 1.442695
    %v222 = vpow.pop %v221
    %225 = vset.pattern.permute.xlu0 0
    %226 = vperm.xlu0 %225, %v220
    %v227 = vpop.permute.xlu0 %226
    %228 = vset.pattern.permute.xlu0 0
    %229 = vperm.xlu0 %228, %v222
    %v230 = vpop.permute.xlu0 %229
    %v231 = vlaneseq
    %v232 = vshrl.u32 %v231, 7
    %v233 = vsub.s32 %v190, %v232
    %v234 = vrot.slane %v227, %v233
    %v235 = vlaneseq
    %v236 = vshrl.u32 %v235, 7
    %v237 = vsub.s32 %v190, %v236
    %v238 = vrot.slane %v230, %v237
    %v239 = vsel %vm199, %v238, %v234
    %v241 = vsel %vm202, %v239, 0.0
    %242 = vadd.xlane.f32.xlu0 %v241
    %v243 = vpop.xlane.xlu0 %242
    %v244 = vrcp.pop %v243
    %v246 = vlaneseq
    %v247 = vshrl.u32 %v246, 7
    %v248 = vsub.s32 0, %v247
    %v249 = vrot.slane %v244, %v248
    %v250 = vlaneseq
    %v251 = vshrl.u32 %v250, 7
    %v252 = vsub.s32 1, %v251
    %v253 = vrot.slane %v244, %v252
    %v256 = vmul.f32 %v220, %v249
    %v257 = vmul.f32 %v222, %v253
    %260 = vset.pattern.permute.xlu0 0
    %261 = vperm.xlu0 %260, %v256
    %v262 = vpop.permute.xlu0 %261
    %263 = vset.pattern.permute.xlu0 0
    %264 = vperm.xlu0 %263, %v257
    %v265 = vpop.permute.xlu0 %264
    %v266 = vlaneseq
    %v267 = vshrl.u32 %v266, 7
    %v268 = vsub.s32 %v190, %v267
    %v269 = vrot.slane %v262, %v268
    %v270 = vlaneseq
    %v271 = vshrl.u32 %v270, 7
    %v272 = vsub.s32 %v190, %v271
    %v273 = vrot.slane %v265, %v272
    %v274 = vsel %vm199, %v273, %v269
    %276 = vst.msk [vmem:[#allocation7] sm:$0x3] %vm202, %v274
    // Predicated region
    $region26: #{tpu_custom_call.1} parent=1 // pred_check
      _
    $region27: #{tpu_custom_call.1} parent=1 // pred_check_branch
      %278 = sbr.rel (0) target = $region29
    $region28: #{tpu_custom_call.1} parent=1 // pred_region
      %s280 = ssub.s32 32, 32
      %281 = vsyncadd [#allocation4], %s280
      %s283 = sshll.u32 [#allocation7], 4
      %s284 = int_to_ptr.vmem [resolvable:$true] %s283
      %286 = dma.vmem_to_hbm [thread:$0]  %s284, 32, %s4, [#allocation4]
    $region29: #{tpu_custom_call.1} parent=1 // pred_fallthru
      _
    // Predicated region
    $region30: #{tpu_custom_call.1} parent=1 // pred_check
      _
    $region31: #{tpu_custom_call.1} parent=1 // pred_check_branch
      %288 = sbr.rel (0) target = $region33
    $region32: #{tpu_custom_call.1} parent=1 // pred_region
      %289 = dma.done [#allocation4], 32
    $region33: #{tpu_custom_call.1} parent=1 // pred_fallthru
      _
    %290 = vsyncpa [#allocation3], 1
    %291 = vsyncpa [#allocation6], 1
    %292 = vsyncpa [#allocation4], 1

</llo_original>
